<compile_context>
chip_gen: v7x
topology: tpu7x:2x2x1
jax: 0.10.0
libtpu: 0.0.40
codegen_flags: <defaults>
</compile_context>

<pallas_src>
import functools

import jax
import jax.numpy as jnp
from jax.experimental import pallas as pl
from jax.experimental.pallas import tpu as pltpu


def _conv3x3_tanh_kernel(p_ref, w_ref, b_ref, o_ref, *, batch_tile, spatial):
    # p_ref: (K, batch_tile*spatial)  im2col patches, lane = b*HW + y*W + x
    # w_ref: (Cout, K)                flattened filter, k = c*9 + ky*3 + kx
    # b_ref: (Cout, 1)                bias (broadcast along lanes)
    # o_ref: (batch_tile, Cout, spatial)  NCHW-flattened output
    acc = jnp.dot(w_ref[...], p_ref[...],
                  preferred_element_type=jnp.float32)       # one MXU pass
    acc = acc + b_ref[...]                                   # lane-broadcast bias
    y = jnp.tanh(acc).astype(o_ref.dtype)                    # EUP tanh
    for b in range(batch_tile):                               # static, lane-aligned slices
        o_ref[b] = y[:, b * spatial:(b + 1) * spatial]


def conv_block_tanh(x_nchw, weight, bias, *, batch_tile=None):
    """x_nchw: (B, Cin, H, W); weight: (Cout, Cin, 3, 3); bias: (Cout,)."""
    B, Cin, H, W = x_nchw.shape
    Cout = weight.shape[0]
    K = 9 * Cin          # im2col contraction dim
    M = H * W            # spatial (lane) dim per batch element
    itemsize = jnp.dtype(x_nchw.dtype).itemsize

    if batch_tile is None:
        # Fold as many batch elements as possible into the lane dim of one GEMM,
        # keeping the (patches + output) tile well inside the default VMEM window
        # and partial-batch tiles 128-lane aligned.
        budget = 4 << 20

        def ok(bt):
            lanes_ok = (bt == B) or ((bt * M) % 128 == 0)
            return (B % bt == 0) and lanes_ok and (K + Cout) * bt * M * itemsize <= budget

        batch_tile = B
        while batch_tile > 1 and not ok(batch_tile):
            batch_tile -= 1
    assert B % batch_tile == 0

    # --- wrapper glue: im2col with pad=1 folded in (fused XLA prologue).
    # patches[c*9 + ky*3 + kx, b*H*W + y*W + x] = x_pad[b, c, y+ky, x+kx]
    x_pad = jnp.pad(x_nchw, ((0, 0), (0, 0), (1, 1), (1, 1)))
    taps = [x_pad[:, :, ky:ky + H, kx:kx + W]
            for ky in range(3) for kx in range(3)]            # 9 x (B, Cin, H, W)
    patches = (jnp.stack(taps, axis=2)                        # (B, Cin, 9, H, W)
               .transpose(1, 2, 0, 3, 4)                      # (Cin, 9, B, H, W)
               .reshape(K, B * M))                            # lane-dense GEMM RHS

    # weight (Cout, Cin, 3, 3) -> (Cout, 9*Cin), same row-major (c, ky, kx) order.
    w_flat = weight.reshape(Cout, K)
    b2 = bias.reshape(Cout, 1)

    kernel = functools.partial(_conv3x3_tanh_kernel,
                               batch_tile=batch_tile, spatial=M)

    out_flat = pl.pallas_call(
        kernel,
        out_shape=jax.ShapeDtypeStruct((B, Cout, M), x_nchw.dtype),
        grid_spec=pltpu.PrefetchScalarGridSpec(
            num_scalar_prefetch=0,
            grid=(B // batch_tile,),
            in_specs=[
                pl.BlockSpec((K, batch_tile * M), lambda i: (0, i)),
                pl.BlockSpec((Cout, K), lambda i: (0, 0)),   # resident across grid
                pl.BlockSpec((Cout, 1), lambda i: (0, 0)),   # resident across grid
            ],
            out_specs=pl.BlockSpec((batch_tile, Cout, M), lambda i: (i, 0, 0)),
        ),
        compiler_params=pltpu.CompilerParams(
            dimension_semantics=("parallel",)),               # shards -> 2 TCs on v7x
    )(patches, w_flat, b2)

    # Already NCHW-ordered; reshape is layout-free (no transpose, no extra HBM pass).
    return out_flat.reshape(B, Cout, H, W)


if __name__ == "__main__":
    B, Cin, Cout, H, W = 2, 4, 8, 16, 16

    key = jax.random.PRNGKey(0)
    k_x, k_w, k_b = jax.random.split(key, 3)
    x = jax.random.normal(k_x, (B, Cin, H, W), dtype=jnp.float32)
    # Shapes match nn.Conv2d(Cin, Cout, 3, padding=1, bias=True)
    weight = jax.random.normal(k_w, (Cout, Cin, 3, 3), dtype=jnp.float32) * 0.1
    bias = jax.random.normal(k_b, (Cout,), dtype=jnp.float32) * 0.1

    fwd = jax.jit(conv_block_tanh)   # fuses the im2col prologue around the kernel
    out = jax.block_until_ready(fwd(x, weight, bias))

    # Sanity check against a pure-JAX reference (NCHW conv + bias + tanh).
    ref = jnp.tanh(
        jax.lax.conv_general_dilated(
            x, weight, window_strides=(1, 1), padding=((1, 1), (1, 1)),
            dimension_numbers=("NCHW", "OIHW", "NCHW"))
        + bias[None, :, None, None])
    assert out.shape == (B, Cout, H, W)
    assert jnp.max(jnp.abs(out - ref)) < 2e-5

    print("KERNEL_OK")
</pallas_src>

<mosaic_0001>
module attributes {stable_mosaic.version = 11 : i64} {
  func.func @_conv3x3_tanh_kernel(%arg0: i32, %arg1: memref<36x512xf32, #tpu.memory_space<vmem>>, %arg2: memref<8x36xf32, #tpu.memory_space<vmem>>, %arg3: memref<8x1xf32, #tpu.memory_space<vmem>>, %arg4: memref<2x8x256xf32, #tpu.memory_space<vmem>>) attributes {dimension_semantics = [#tpu.dimension_semantics<parallel>], iteration_bounds = array<i64: 1>, scalar_prefetch = 0 : i64, scratch_operands = 0 : i64, tpu.core_type = #tpu.core_type<tc>, window_params = [{transform_indices = @transform_0, window_bounds = array<i64: 36, 512>}, {pipeline_mode = #tpu.pipeline_mode<synchronous>, transform_indices = @transform_1, window_bounds = array<i64: 8, 36>}, {pipeline_mode = #tpu.pipeline_mode<synchronous>, transform_indices = @transform_2, window_bounds = array<i64: 8, 1>}, {transform_indices = @transform_3, window_bounds = array<i64: 2, 8, 256>}]} {
    %c0 = arith.constant 0 : index
    %c0_0 = arith.constant 0 : index
    %0 = vector.load %arg2[%c0, %c0_0] : memref<8x36xf32, #tpu.memory_space<vmem>>, vector<8x36xf32>
    %c0_1 = arith.constant 0 : index
    %c0_2 = arith.constant 0 : index
    %1 = vector.load %arg1[%c0_1, %c0_2] : memref<36x512xf32, #tpu.memory_space<vmem>>, vector<36x512xf32>
    %cst = arith.constant dense<0.000000e+00> : vector<8x512xf32>
    %2 = tpu.matmul %0, %1, %cst {dimension_numbers = #tpu.dot_dimension_numbers<[1], [0], [0], [1], [0, 0, 1, 1], [], []>} : vector<8x36xf32>, vector<36x512xf32>, vector<8x512xf32> -> vector<8x512xf32>
    %c0_3 = arith.constant 0 : index
    %c0_4 = arith.constant 0 : index
    %3 = vector.load %arg3[%c0_3, %c0_4] : memref<8x1xf32, #tpu.memory_space<vmem>>, vector<8x1xf32>
    %4 = vector.broadcast %3 : vector<8x1xf32> to vector<8x512xf32>
    %5 = arith.addf %2, %4 : vector<8x512xf32>
    %6 = math.tanh %5 : vector<8x512xf32>
    %7 = vector.extract_strided_slice %6 {offsets = [0, 0], sizes = [8, 256], strides = [1, 1]} : vector<8x512xf32> to vector<8x256xf32>
    %c0_5 = arith.constant 0 : index
    %c0_6 = arith.constant 0 : index
    %c0_7 = arith.constant 0 : index
    %8 = vector.load %arg4[%c0_5, %c0_6, %c0_7] : memref<2x8x256xf32, #tpu.memory_space<vmem>>, vector<1x8x256xf32>
    %9 = vector.shape_cast %8 : vector<1x8x256xf32> to vector<8x256xf32>
    %10 = vector.shape_cast %7 : vector<8x256xf32> to vector<1x8x256xf32>
    tpu.vector_store %arg4[%c0_5, %c0_6, %c0_7], %10 {strides = array<i32>} : memref<2x8x256xf32, #tpu.memory_space<vmem>>, vector<1x8x256xf32>,
    %11 = vector.extract_strided_slice %6 {offsets = [0, 256], sizes = [8, 256], strides = [1, 1]} : vector<8x512xf32> to vector<8x256xf32>
    %c1 = arith.constant 1 : index
    %c0_8 = arith.constant 0 : index
    %c0_9 = arith.constant 0 : index
    %12 = vector.load %arg4[%c1, %c0_8, %c0_9] : memref<2x8x256xf32, #tpu.memory_space<vmem>>, vector<1x8x256xf32>
    %13 = vector.shape_cast %12 : vector<1x8x256xf32> to vector<8x256xf32>
    %14 = vector.shape_cast %11 : vector<8x256xf32> to vector<1x8x256xf32>
    tpu.vector_store %arg4[%c1, %c0_8, %c0_9], %14 {strides = array<i32>} : memref<2x8x256xf32, #tpu.memory_space<vmem>>, vector<1x8x256xf32>,
    return
  }
  func.func @transform_0(%arg0: i32) -> (i32, i32) {
    %c0_i32 = arith.constant 0 : i32
    %c0_i32_0 = arith.constant 0 : i32
    return %c0_i32, %arg0 : i32, i32
  }
  func.func @transform_1(%arg0: i32) -> (i32, i32) {
    %c0_i32 = arith.constant 0 : i32
    %c0_i32_0 = arith.constant 0 : i32
    %c0_i32_1 = arith.constant 0 : i32
    return %c0_i32, %c0_i32_0 : i32, i32
  }
  func.func @transform_2(%arg0: i32) -> (i32, i32) {
    %c0_i32 = arith.constant 0 : i32
    %c0_i32_0 = arith.constant 0 : i32
    %c0_i32_1 = arith.constant 0 : i32
    return %c0_i32, %c0_i32_0 : i32, i32
  }
  func.func @transform_3(%arg0: i32) -> (i32, i32, i32) {
    %c0_i32 = arith.constant 0 : i32
    %c0_i32_0 = arith.constant 0 : i32
    %c0_i32_1 = arith.constant 0 : i32
    return %arg0, %c0_i32, %c0_i32_0 : i32, i32, i32
  }
}

</mosaic_0001>

<llo_original>
// kernel: conv_block_tanh.1
$region0: #{conv_block_tanh.1}
  #allocation0 [shape = 'u32[]', space=smem, size = 0x4, offset = 0x4, fixed_abs, tag = 'smem constant byte address 0x4 - core index']
  #allocation1 [shape = 'u32[144,128]{1,0:T(1,128)}', space=vmem, size = 0x12000, scoped, tag = 'internal scratch']
  %s0 = inlined_call_operand.vmem [shape: f32[36,512], index: 0, kind: input, shape index: {}]
  %s1 = inlined_call_operand.vmem [shape: f32[8,36], index: 1, kind: input, shape index: {}]
  %s2 = inlined_call_operand.vmem [shape: f32[8,1], index: 2, kind: input, shape index: {}]
  %s3 = inlined_call_operand.vmem [shape: f32[2,8,256], index: 3, kind: output, shape index: {}]
  %s4 = sld [smem:[#allocation0]]
  $region22: #{conv_block_tanh.1} parent=0
    _
  %s6 = ssub.s32 1, %s4
  %s7 = scalar_select 0, %s6, %s4
  // Predicated region
  $region2: #{conv_block_tanh.1} parent=0 // pred_check
    _
  $region3: #{conv_block_tanh.1} parent=0 // pred_check_branch
    %9 = sbr.rel (0) target = $region5
  $region4: #{conv_block_tanh.1} parent=0 // pred_region
    _
  $region5: #{conv_block_tanh.1} parent=0 // pred_fallthru
    _
  // Predicated region
  $region6: #{conv_block_tanh.1} parent=0 // pred_check
    _
  $region7: #{conv_block_tanh.1} parent=0 // pred_check_branch
    %11 = sbr.rel (0) target = $region9
  $region8: #{conv_block_tanh.1} parent=0 // pred_region
    _
  $region9: #{conv_block_tanh.1} parent=0 // pred_fallthru
    _
  // Predicated region
  $region10: #{conv_block_tanh.1} parent=0 // pred_check
    _
  $region11: #{conv_block_tanh.1} parent=0 // pred_check_branch
    %13 = sbr.rel (0) target = $region13
  $region12: #{conv_block_tanh.1} parent=0 // pred_region
    _
  $region13: #{conv_block_tanh.1} parent=0 // pred_fallthru
    _
  %v14 = vld [vmem:[%s1] sm:$0xff]
  %v15 = vld [vmem:[%s0] sm:$0xff]
  %v16 = vld [vmem:[%s0 + $0x8] sm:$0xff]
  %v17 = vld [vmem:[%s0 + $0x10] sm:$0xff]
  %v18 = vld [vmem:[%s0 + $0x18] sm:$0xff]
  %v19 = vld [vmem:[%s0 + $0x20] sm:$0xff]
  %v20 = vld [vmem:[%s0 + $0x28] sm:$0xff]
  %v21 = vld [vmem:[%s0 + $0x30] sm:$0xff]
  %v22 = vld [vmem:[%s0 + $0x38] sm:$0xff]
  %v23 = vld [vmem:[%s0 + $0x40] sm:$0xff]
  %v24 = vld [vmem:[%s0 + $0x48] sm:$0xff]
  %v25 = vld [vmem:[%s0 + $0x50] sm:$0xff]
  %v26 = vld [vmem:[%s0 + $0x58] sm:$0xff]
  %v27 = vld [vmem:[%s0 + $0x60] sm:$0xff]
  %v28 = vld [vmem:[%s0 + $0x68] sm:$0xff]
  %v29 = vld [vmem:[%s0 + $0x70] sm:$0xff]
  %v30 = vld [vmem:[%s0 + $0x78] sm:$0xff]
  %v31 = vld [vmem:[%s0 + $0x80] sm:$0xf]
  %v32 = vld [vmem:[%s0 + $0x88] sm:$0xf]
  %v33 = vld [vmem:[%s0 + $0x90] sm:$0xf]
  %v34 = vld [vmem:[%s0 + $0x98] sm:$0xf]
  %v35 = vld [vmem:[%s2] sm:$0xff]
  %37 = vset.pattern.permute.xlu0 0
  %38 = vperm.xlu0 %37, %v35
  %v39 = vpop.permute.xlu0 %38
  %vm41 = vcmask 293888
  %v43 = vsel %vm41, %v14, 0
  %vm45 = vcmask 1043456
  %v47 = vsel %vm45, %v31, 0
  %v50 = vsel %vm45, %v32, 0
  %v53 = vsel %vm45, %v33, 0
  %v56 = vsel %vm45, %v34, 0
  %58 = vmatprep.subr.mxu0 %v16
  %59 = vmatpush1.msra.mxu0 %v15
  %60 = vmatprep.subr.mxu0 %v20
  %61 = vmatpush1.msra.mxu0 %v19
  %62 = vmatprep.subr.mxu0 %v24
  %63 = vmatpush1.msra.mxu0 %v23
  %64 = vmatprep.subr.mxu0 %v28
  %65 = vmatpush1.msra.mxu0 %v27
  %66 = vmatprep.subr.mxu0 %v50
  %67 = vmatpush1.msra.mxu0 %v47
  %68 = vmatprep.subr.mxu0 0.0
  %69 = vmatpush1.msra.mxu0 0.0
  %70 = vmatprep.subr.mxu0 0.0
  %71 = vmatpush1.msra.mxu0 0.0
  %72 = vmatprep.subr.mxu0 0.0
  %73 = vmatpush1.msra.mxu0 0.0
  %74 = vmatprep.subr.mxu0 0.0
  %75 = vmatpush1.msra.mxu0 0.0
  %76 = vmatprep.subr.mxu0 0.0
  %77 = vmatpush1.msra.mxu0 0.0
  %78 = vmatprep.subr.mxu0 0.0
  %79 = vmatpush1.msra.mxu0 0.0
  %80 = vmatprep.subr.mxu0 0.0
  %81 = vmatpush1.msra.mxu0 0.0
  %82 = vmatprep.subr.mxu0 0.0
  %83 = vmatpush1.msra.mxu0 0.0
  %84 = vmatprep.subr.mxu0 0.0
  %85 = vmatpush1.msra.mxu0 0.0
  %86 = vmatprep.subr.mxu0 0.0
  %87 = vmatpush1.msra.mxu0 0.0
  %88 = vmatprep.subr.mxu0 0.0
  %89 = vmatpush1.msra.mxu0 0.0
  %90 = vmatprep.subr.mxu0 0.0
  %91 = vmatpush1.msra.mxu0 0.0
  %92 = vmatprep.subr.mxu0 0.0
  %93 = vmatpush1.msra.mxu0 0.0
  %94 = vmatprep.subr.mxu0 0.0
  %95 = vmatpush1.msra.mxu0 0.0
  %96 = vmatprep.subr.mxu0 0.0
  %97 = vmatpush1.msra.mxu0 0.0
  %98 = vmatprep.subr.mxu0 0.0
  %99 = vmatpush1.msra.mxu0 0.0
  %100 = vmatprep.subr.mxu0 0.0
  %101 = vmatpush1.msra.mxu0 0.0
  %102 = vmatprep.subr.mxu0 0.0
  %103 = vmatpush1.msra.mxu0 0.0
  %104 = vmatprep.subr.mxu0 0.0
  %105 = vmatpush1.msra.mxu0 0.0
  %106 = vmatprep.subr.mxu0 0.0
  %107 = vmatpush1.msra.mxu0 0.0
  %108 = vmatprep.subr.mxu0 0.0
  %109 = vmatpush1.msra.mxu0 0.0
  %110 = vmatprep.subr.mxu0 0.0
  %111 = vmatpush1.msra.mxu0 0.0
  %112 = vmatprep.subr.mxu0 0.0
  %113 = vmatpush1.msra.mxu0 0.0
  %114 = vmatprep.subr.mxu0 0.0
  %115 = vmatpush1.msra.mxu0 0.0
  %116 = vmatprep.subr.mxu0 0.0
  %117 = vmatpush1.msra.mxu0 0.0
  %118 = vmatprep.subr.mxu0 0.0
  %119 = vmatpush1.msra.mxu0 0.0
  %120 = vmatprep.subr.mxu0 0.0
  %121 = vmatpush1.msra.mxu0 0.0
  %122 = vmatprep.mubr.f32.mxu0 0.0
  %123 = vmatmul.mubr.f32.gmra.mrb[0].mxu0 %v43
  %v124 = vpop.f32.mrb[0].mxu0
  %v125 = vadd.f32 %v39, %v124
  %v126 = vpop.f32.mrb[0].mxu0
  %v127 = vadd.f32 %v39, %v126
  %128 = vdwg.mxu0
  %129 = vmatprep.subr.mxu0 %v18
  %130 = vmatpush1.msra.mxu0 %v17
  %131 = vmatprep.subr.mxu0 %v22
  %132 = vmatpush1.msra.mxu0 %v21
  %133 = vmatprep.subr.mxu0 %v26
  %134 = vmatpush1.msra.mxu0 %v25
  %135 = vmatprep.subr.mxu0 %v30
  %136 = vmatpush1.msra.mxu0 %v29
  %137 = vmatprep.subr.mxu0 %v56
  %138 = vmatpush1.msra.mxu0 %v53
  %139 = vmatprep.subr.mxu0 0.0
  %140 = vmatpush1.msra.mxu0 0.0
  %141 = vmatprep.subr.mxu0 0.0
  %142 = vmatpush1.msra.mxu0 0.0
  %143 = vmatprep.subr.mxu0 0.0
  %144 = vmatpush1.msra.mxu0 0.0
  %145 = vmatprep.subr.mxu0 0.0
  %146 = vmatpush1.msra.mxu0 0.0
  %147 = vmatprep.subr.mxu0 0.0
  %148 = vmatpush1.msra.mxu0 0.0
  %149 = vmatprep.subr.mxu0 0.0
  %150 = vmatpush1.msra.mxu0 0.0
  %151 = vmatprep.subr.mxu0 0.0
  %152 = vmatpush1.msra.mxu0 0.0
  %153 = vmatprep.subr.mxu0 0.0
  %154 = vmatpush1.msra.mxu0 0.0
  %155 = vmatprep.subr.mxu0 0.0
  %156 = vmatpush1.msra.mxu0 0.0
  %157 = vmatprep.subr.mxu0 0.0
  %158 = vmatpush1.msra.mxu0 0.0
  %159 = vmatprep.subr.mxu0 0.0
  %160 = vmatpush1.msra.mxu0 0.0
  %161 = vmatprep.subr.mxu0 0.0
  %162 = vmatpush1.msra.mxu0 0.0
  %163 = vmatprep.subr.mxu0 0.0
  %164 = vmatpush1.msra.mxu0 0.0
  %165 = vmatprep.subr.mxu0 0.0
  %166 = vmatpush1.msra.mxu0 0.0
  %167 = vmatprep.subr.mxu0 0.0
  %168 = vmatpush1.msra.mxu0 0.0
  %169 = vmatprep.subr.mxu0 0.0
  %170 = vmatpush1.msra.mxu0 0.0
  %171 = vmatprep.subr.mxu0 0.0
  %172 = vmatpush1.msra.mxu0 0.0
  %173 = vmatprep.subr.mxu0 0.0
  %174 = vmatpush1.msra.mxu0 0.0
  %175 = vmatprep.subr.mxu0 0.0
  %176 = vmatpush1.msra.mxu0 0.0
  %177 = vmatprep.subr.mxu0 0.0
  %178 = vmatpush1.msra.mxu0 0.0
  %179 = vmatprep.subr.mxu0 0.0
  %180 = vmatpush1.msra.mxu0 0.0
  %181 = vmatprep.subr.mxu0 0.0
  %182 = vmatpush1.msra.mxu0 0.0
  %183 = vmatprep.subr.mxu0 0.0
  %184 = vmatpush1.msra.mxu0 0.0
  %185 = vmatprep.subr.mxu0 0.0
  %186 = vmatpush1.msra.mxu0 0.0
  %187 = vmatprep.subr.mxu0 0.0
  %188 = vmatpush1.msra.mxu0 0.0
  %189 = vmatprep.subr.mxu0 0.0
  %190 = vmatpush1.msra.mxu0 0.0
  %191 = vmatprep.subr.mxu0 0.0
  %192 = vmatpush1.msra.mxu0 0.0
  %193 = vmatprep.mubr.f32.mxu0 0.0
  %194 = vmatmul.mubr.f32.gmra.mrb[0].mxu0 %v43
  %v195 = vpop.f32.mrb[0].mxu0
  %v196 = vadd.f32 %v39, %v195
  %v197 = vpop.f32.mrb[0].mxu0
  %v198 = vadd.f32 %v39, %v197
  %199 = vdwg.mxu0
  %v200 = vtanh.pop %v125
  %v201 = vtanh.pop %v127
  %v202 = vtanh.pop %v196
  %v203 = vtanh.pop %v198
  %204 = vst [vmem:[%s3] sm:$0xff] %v200
  %205 = vst [vmem:[%s3 + $0x8] sm:$0xff] %v201
  %s206 = scalar_lea.vmem %s3, 16
  %207 = vst [vmem:[%s206] sm:$0xff] %v202
  %208 = vst [vmem:[%s206 + $0x8] sm:$0xff] %v203
  // Predicated region
  $region14: #{conv_block_tanh.1} parent=0 // pred_check
    _
  $region15: #{conv_block_tanh.1} parent=0 // pred_check_branch
    %210 = sbr.rel (0) target = $region17
  $region16: #{conv_block_tanh.1} parent=0 // pred_region
    _
  $region17: #{conv_block_tanh.1} parent=0 // pred_fallthru
    _
  // Predicated region
  $region18: #{conv_block_tanh.1} parent=0 // pred_check
    _
  $region19: #{conv_block_tanh.1} parent=0 // pred_check_branch
    %212 = sbr.rel (0) target = $region21
  $region20: #{conv_block_tanh.1} parent=0 // pred_region
    _
  $region21: #{conv_block_tanh.1} parent=0 // pred_fallthru
    _

</llo_original>
